<compile_context>
chip_gen: v7x
topology: tpu7x:2x2x1
jax: 0.10.0
libtpu: 0.0.40
codegen_flags: <defaults>
</compile_context>

<pallas_src>
import numpy as np
import jax
import jax.numpy as jnp
from jax.experimental import pallas as pl
from jax.experimental.pallas import tpu as pltpu


def _round_up(x, m):
    return ((x + m - 1) // m) * m


# ---------------------------------------------------------------------------
# Pallas kernel: separable bilinear resize, all channels fused in one launch.
#   out[c, :, wtile] = Wh @ (img[c] @ Wwt[:, wtile])
# ---------------------------------------------------------------------------
def _bilinear_resize_kernel(wh_ref, wwt_ref, img_ref, out_ref):
    # wh_ref : (H_PAD, H_in)       bf16  row weights (zero rows past out_h)
    # wwt_ref: (W_in, TILE_W)      bf16  tile of pre-transposed column weights
    # img_ref: (C, H_in, W_in)     native dtype
    # out_ref: (C, H_PAD, TILE_W)  image dtype
    wh = wh_ref[...]                                   # hoisted loads
    wwt = wwt_ref[...]
    for c in range(out_ref.shape[0]):                  # static unroll, C in {1..4}
        img_c = img_ref[c].astype(jnp.bfloat16)        # on-chip cast, copy-free slice
        # column pass: lane-dense MXU matmul for this channel's output tile
        t = jnp.dot(img_c, wwt, preferred_element_type=jnp.float32)
        # row pass
        out_ref[c] = jnp.dot(
            wh, t.astype(jnp.bfloat16), preferred_element_type=jnp.float32
        ).astype(out_ref.dtype)


def _resize_image_bilinear(image_chw, out_h, out_w):
    """PIL-BILINEAR-equivalent resize of a CHW image via the Pallas kernel."""
    C, H_in, W_in = image_chw.shape

    h_pad = _round_up(out_h, 8)
    w_pad = _round_up(out_w, 128)
    # biggest lane-aligned tile that divides the padded width (no extra pad)
    tile_w = max(t for t in (512, 384, 256, 128) if w_pad % t == 0)

    wh = jnp.asarray(_pil_bilinear_weights(out_h, H_in, h_pad), dtype=jnp.bfloat16)
    wwt = jnp.asarray(_pil_bilinear_weights(out_w, W_in, w_pad).T, dtype=jnp.bfloat16)

    out_padded = pl.pallas_call(
        _bilinear_resize_kernel,
        out_shape=jax.ShapeDtypeStruct((C, h_pad, w_pad), image_chw.dtype),
        grid_spec=pltpu.PrefetchScalarGridSpec(
            num_scalar_prefetch=0,
            grid=(w_pad // tile_w,),
            in_specs=[
                pl.BlockSpec((h_pad, H_in), lambda j: (0, 0)),      # Wh (constant -> no re-DMA)
                pl.BlockSpec((W_in, tile_w), lambda j: (0, j)),     # Wwt column tile
                pl.BlockSpec((C, H_in, W_in), lambda j: (0, 0, 0)), # image (constant -> no re-DMA)
            ],
            out_specs=pl.BlockSpec((C, h_pad, tile_w), lambda j: (0, 0, j)),
        ),
        compiler_params=pltpu.CompilerParams(
            dimension_semantics=("parallel",),
            vmem_limit_bytes=48 * 1024 * 1024,  # > 32 MiB scoped default, < v7x 64 MiB physical
        ),
    )(wh, wwt, image_chw)
    return out_padded[:, :out_h, :out_w]


# ---------------------------------------------------------------------------
# Host-side glue: PIL-exact interpolation weights / indices (numpy)
# ---------------------------------------------------------------------------
def _pil_bilinear_weights(out_size, in_size, pad_to):
    """PIL BILINEAR separable weights (triangle filter, antialias on downscale)."""
    scale = in_size / out_size
    filterscale = max(scale, 1.0)
    support = 1.0 * filterscale
    W = np.zeros((pad_to, in_size), dtype=np.float32)
    for i in range(out_size):
        center = (i + 0.5) * scale
        xmin = max(int(center - support + 0.5), 0)
        xmax = min(int(center + support + 0.5), in_size)
        xs = np.arange(xmin, xmax, dtype=np.float64)
        w = np.clip(1.0 - np.abs((xs + 0.5 - center) / filterscale), 0.0, None)
        s = w.sum()
        if s > 0.0:
            W[i, xmin:xmax] = (w / s).astype(np.float32)
    return W


def _pil_nearest_indices(out_size, in_size):
    """PIL NEAREST source indices: floor((dst + 0.5) * in/out)."""
    scale = in_size / out_size
    idx = np.floor((np.arange(out_size, dtype=np.float64) + 0.5) * scale)
    return np.clip(idx.astype(np.int32), 0, in_size - 1)


def _resize_target_nearest(target, out_h, out_w):
    # Pure O(H_out*W_out) gather -> exact for any label range; deliberately NOT
    # lowered to an MXU one-hot matmul.
    rows = jnp.asarray(_pil_nearest_indices(out_h, target.shape[-2]))
    cols = jnp.asarray(_pil_nearest_indices(out_w, target.shape[-1]))
    return jnp.take(jnp.take(target, rows, axis=-2), cols, axis=-1)


# ---------------------------------------------------------------------------
# Module-equivalent wrapper
# ---------------------------------------------------------------------------
class RandomResizePair:
    def __init__(self, min_scale, max_scale, base_size=None):
        self.min_scale = float(min_scale)
        self.max_scale = float(max_scale)
        self.base_size = base_size

    def __call__(self, sample, *, rng=None):
        image, target = sample                      # image: CHW float, target: [C]HW int
        u = float(rng.random()) if rng is not None else float(np.random.random_sample())
        resize_scale = u * (self.max_scale - self.min_scale) + self.min_scale

        if self.base_size is not None:
            base_h, base_w = self.base_size
        else:
            base_h, base_w = image.shape[-2], image.shape[-1]
        out_h = int(base_h * resize_scale)
        out_w = int(base_w * resize_scale)

        resized_image = _resize_image_bilinear(image, out_h, out_w)
        resized_target = _resize_target_nearest(target, out_h, out_w)
        return resized_image, resized_target


if __name__ == "__main__":
    key = jax.random.PRNGKey(0)
    k_img, k_tgt = jax.random.split(key)

    # small deterministic inputs: image (3,16,16) f32, target (1,16,16) i32
    image = jax.random.uniform(k_img, (3, 16, 16), dtype=jnp.float32)
    target = jax.random.randint(k_tgt, (1, 16, 16), 0, 21, dtype=jnp.int32)

    # identity-scale sanity probe (bilinear weights become one-hot rows)
    same_img = _resize_image_bilinear(image, 16, 16)
    same_tgt = _resize_target_nearest(target, 16, 16)
    jax.block_until_ready(same_img)
    assert same_img.shape == image.shape
    np.testing.assert_allclose(np.asarray(same_img), np.asarray(image), atol=2e-2)
    np.testing.assert_array_equal(np.asarray(same_tgt), np.asarray(target))

    # random resize (numpy host RNG, as in the original module)
    op = RandomResizePair(min_scale=0.5, max_scale=2.0, base_size=None)
    resized_image, resized_target = op((image, target), rng=np.random.default_rng(0))

    jax.block_until_ready(resized_image)
    jax.block_until_ready(resized_target)
    assert resized_image.shape[0] == 3
    assert resized_image.shape[-2:] == resized_target.shape[-2:]
    assert resized_image.dtype == image.dtype and resized_target.dtype == target.dtype
    print("KERNEL_OK")
</pallas_src>

<mosaic_0001>
module attributes {stable_mosaic.version = 11 : i64} {
  func.func @_bilinear_resize_kernel(%arg0: i32, %arg1: memref<16x16xbf16, #tpu.memory_space<vmem>>, %arg2: memref<16x128xbf16, #tpu.memory_space<vmem>>, %arg3: memref<3x16x16xf32, #tpu.memory_space<vmem>>, %arg4: memref<3x16x128xf32, #tpu.memory_space<vmem>>) attributes {dimension_semantics = [#tpu.dimension_semantics<parallel>], iteration_bounds = array<i64: 1>, scalar_prefetch = 0 : i64, scratch_operands = 0 : i64, tpu.core_type = #tpu.core_type<tc>, window_params = [{pipeline_mode = #tpu.pipeline_mode<synchronous>, transform_indices = @transform_0, window_bounds = array<i64: 16, 16>}, {transform_indices = @transform_1, window_bounds = array<i64: 16, 128>}, {pipeline_mode = #tpu.pipeline_mode<synchronous>, transform_indices = @transform_2, window_bounds = array<i64: 3, 16, 16>}, {transform_indices = @transform_3, window_bounds = array<i64: 3, 16, 128>}]} {
    %c0 = arith.constant 0 : index
    %c0_0 = arith.constant 0 : index
    %0 = vector.load %arg1[%c0, %c0_0] : memref<16x16xbf16, #tpu.memory_space<vmem>>, vector<16x16xbf16>
    %c0_1 = arith.constant 0 : index
    %c0_2 = arith.constant 0 : index
    %1 = vector.load %arg2[%c0_1, %c0_2] : memref<16x128xbf16, #tpu.memory_space<vmem>>, vector<16x128xbf16>
    %c0_3 = arith.constant 0 : index
    %c0_4 = arith.constant 0 : index
    %c0_5 = arith.constant 0 : index
    %2 = vector.load %arg3[%c0_3, %c0_4, %c0_5] : memref<3x16x16xf32, #tpu.memory_space<vmem>>, vector<1x16x16xf32>
    %3 = vector.shape_cast %2 : vector<1x16x16xf32> to vector<16x16xf32>
    %4 = arith.truncf %3 : vector<16x16xf32> to vector<16x16xbf16>
    %cst = arith.constant dense<0.000000e+00> : vector<16x128xf32>
    %5 = tpu.matmul %4, %1, %cst {dimension_numbers = #tpu.dot_dimension_numbers<[1], [0], [0], [1], [0, 0, 1, 1], [], []>} : vector<16x16xbf16>, vector<16x128xbf16>, vector<16x128xf32> -> vector<16x128xf32>
    %6 = arith.truncf %5 : vector<16x128xf32> to vector<16x128xbf16>
    %cst_6 = arith.constant dense<0.000000e+00> : vector<16x128xf32>
    %7 = tpu.matmul %0, %6, %cst_6 {dimension_numbers = #tpu.dot_dimension_numbers<[1], [0], [0], [1], [0, 0, 1, 1], [], []>} : vector<16x16xbf16>, vector<16x128xbf16>, vector<16x128xf32> -> vector<16x128xf32>
    %c0_7 = arith.constant 0 : index
    %c0_8 = arith.constant 0 : index
    %c0_9 = arith.constant 0 : index
    %8 = vector.load %arg4[%c0_7, %c0_8, %c0_9] : memref<3x16x128xf32, #tpu.memory_space<vmem>>, vector<1x16x128xf32>
    %9 = vector.shape_cast %8 : vector<1x16x128xf32> to vector<16x128xf32>
    %10 = vector.shape_cast %7 : vector<16x128xf32> to vector<1x16x128xf32>
    tpu.vector_store %arg4[%c0_7, %c0_8, %c0_9], %10 {strides = array<i32>} : memref<3x16x128xf32, #tpu.memory_space<vmem>>, vector<1x16x128xf32>,
    %c1 = arith.constant 1 : index
    %c0_10 = arith.constant 0 : index
    %c0_11 = arith.constant 0 : index
    %11 = vector.load %arg3[%c1, %c0_10, %c0_11] : memref<3x16x16xf32, #tpu.memory_space<vmem>>, vector<1x16x16xf32>
    %12 = vector.shape_cast %11 : vector<1x16x16xf32> to vector<16x16xf32>
    %13 = arith.truncf %12 : vector<16x16xf32> to vector<16x16xbf16>
    %cst_12 = arith.constant dense<0.000000e+00> : vector<16x128xf32>
    %14 = tpu.matmul %13, %1, %cst_12 {dimension_numbers = #tpu.dot_dimension_numbers<[1], [0], [0], [1], [0, 0, 1, 1], [], []>} : vector<16x16xbf16>, vector<16x128xbf16>, vector<16x128xf32> -> vector<16x128xf32>
    %15 = arith.truncf %14 : vector<16x128xf32> to vector<16x128xbf16>
    %cst_13 = arith.constant dense<0.000000e+00> : vector<16x128xf32>
    %16 = tpu.matmul %0, %15, %cst_13 {dimension_numbers = #tpu.dot_dimension_numbers<[1], [0], [0], [1], [0, 0, 1, 1], [], []>} : vector<16x16xbf16>, vector<16x128xbf16>, vector<16x128xf32> -> vector<16x128xf32>
    %c1_14 = arith.constant 1 : index
    %c0_15 = arith.constant 0 : index
    %c0_16 = arith.constant 0 : index
    %17 = vector.load %arg4[%c1_14, %c0_15, %c0_16] : memref<3x16x128xf32, #tpu.memory_space<vmem>>, vector<1x16x128xf32>
    %18 = vector.shape_cast %17 : vector<1x16x128xf32> to vector<16x128xf32>
    %19 = vector.shape_cast %16 : vector<16x128xf32> to vector<1x16x128xf32>
    tpu.vector_store %arg4[%c1_14, %c0_15, %c0_16], %19 {strides = array<i32>} : memref<3x16x128xf32, #tpu.memory_space<vmem>>, vector<1x16x128xf32>,
    %c2 = arith.constant 2 : index
    %c0_17 = arith.constant 0 : index
    %c0_18 = arith.constant 0 : index
    %20 = vector.load %arg3[%c2, %c0_17, %c0_18] : memref<3x16x16xf32, #tpu.memory_space<vmem>>, vector<1x16x16xf32>
    %21 = vector.shape_cast %20 : vector<1x16x16xf32> to vector<16x16xf32>
    %22 = arith.truncf %21 : vector<16x16xf32> to vector<16x16xbf16>
    %cst_19 = arith.constant dense<0.000000e+00> : vector<16x128xf32>
    %23 = tpu.matmul %22, %1, %cst_19 {dimension_numbers = #tpu.dot_dimension_numbers<[1], [0], [0], [1], [0, 0, 1, 1], [], []>} : vector<16x16xbf16>, vector<16x128xbf16>, vector<16x128xf32> -> vector<16x128xf32>
    %24 = arith.truncf %23 : vector<16x128xf32> to vector<16x128xbf16>
    %cst_20 = arith.constant dense<0.000000e+00> : vector<16x128xf32>
    %25 = tpu.matmul %0, %24, %cst_20 {dimension_numbers = #tpu.dot_dimension_numbers<[1], [0], [0], [1], [0, 0, 1, 1], [], []>} : vector<16x16xbf16>, vector<16x128xbf16>, vector<16x128xf32> -> vector<16x128xf32>
    %c2_21 = arith.constant 2 : index
    %c0_22 = arith.constant 0 : index
    %c0_23 = arith.constant 0 : index
    %26 = vector.load %arg4[%c2_21, %c0_22, %c0_23] : memref<3x16x128xf32, #tpu.memory_space<vmem>>, vector<1x16x128xf32>
    %27 = vector.shape_cast %26 : vector<1x16x128xf32> to vector<16x128xf32>
    %28 = vector.shape_cast %25 : vector<16x128xf32> to vector<1x16x128xf32>
    tpu.vector_store %arg4[%c2_21, %c0_22, %c0_23], %28 {strides = array<i32>} : memref<3x16x128xf32, #tpu.memory_space<vmem>>, vector<1x16x128xf32>,
    return
  }
  func.func @transform_0(%arg0: i32) -> (i32, i32) {
    %c0_i32 = arith.constant 0 : i32
    %c0_i32_0 = arith.constant 0 : i32
    %c0_i32_1 = arith.constant 0 : i32
    return %c0_i32, %c0_i32_0 : i32, i32
  }
  func.func @transform_1(%arg0: i32) -> (i32, i32) {
    %c0_i32 = arith.constant 0 : i32
    %c0_i32_0 = arith.constant 0 : i32
    return %c0_i32, %arg0 : i32, i32
  }
  func.func @transform_2(%arg0: i32) -> (i32, i32, i32) {
    %c0_i32 = arith.constant 0 : i32
    %c0_i32_0 = arith.constant 0 : i32
    %c0_i32_1 = arith.constant 0 : i32
    %c0_i32_2 = arith.constant 0 : i32
    return %c0_i32, %c0_i32_0, %c0_i32_1 : i32, i32, i32
  }
  func.func @transform_3(%arg0: i32) -> (i32, i32, i32) {
    %c0_i32 = arith.constant 0 : i32
    %c0_i32_0 = arith.constant 0 : i32
    %c0_i32_1 = arith.constant 0 : i32
    return %c0_i32, %c0_i32_0, %arg0 : i32, i32, i32
  }
}

</mosaic_0001>

<llo_original>
// kernel: tpu_custom_call.1
$region0: #{tpu_custom_call.1}
  #allocation0 [shape = 'u32[]', space=smem, size = 0x4, offset = 0x4, fixed_abs, tag = 'smem constant byte address 0x4 - core index']
  #allocation1 [shape = 'u32[144,128]{1,0:T(1,128)}', space=vmem, size = 0x12000, scoped, tag = 'internal scratch']
  %s0 = inlined_call_operand.hbm [shape: bf16[16,16], index: 0, kind: input, shape index: {}]
  %s1 = inlined_call_operand.hbm [shape: bf16[16,128], index: 1, kind: input, shape index: {}]
  %s2 = inlined_call_operand.hbm [shape: f32[3,16,16], index: 2, kind: input, shape index: {}]
  %s3 = inlined_call_operand.hbm [shape: f32[3,16,128], index: 3, kind: output, shape index: {}]
  %s4 = sld [smem:[#allocation0]]
  $region34: #{tpu_custom_call.1} parent=0
    _
  %s6 = ssub.s32 1, %s4
  %s7 = scalar_select 0, %s6, %s4
  $region1: #{tpu_custom_call.1} parent=0
    #allocation2 [shape = 'u8[4096]{0}', space=vmem, size = 0x1000, scoped, tag = 'input window, operand 0, single buffered']
    #allocation3 [shape = 's32[1]{0}', space=sflag, size = 0x4, scoped, tag = 'scoped memory for tpu_custom_call.1']
    #allocation4 [shape = 's32[1]{0}', space=sflag, size = 0x4, scoped, tag = 'scoped memory for tpu_custom_call.1']
    #allocation5 [shape = 'u8[4096]{0}', space=vmem, size = 0x1000, scoped, tag = 'input window, operand 1, single buffered']
    #allocation6 [shape = 's32[1]{0}', space=sflag, size = 0x4, scoped, tag = 'scoped memory for tpu_custom_call.1']
    #allocation7 [shape = 'u8[24576]{0}', space=vmem, size = 0x6000, scoped, tag = 'input window, operand 2, single buffered']
    #allocation8 [shape = 'u8[24576]{0}', space=vmem, size = 0x6000, scoped, tag = 'output window, operand 0, single buffered']
    %8 = vsyncpa [#allocation3], 0
    %9 = vsyncpa [#allocation6], 0
    %10 = vsyncpa [#allocation4], 0
    // Predicated region
    $region2: #{tpu_custom_call.1} parent=1 // pred_check
      _
    $region3: #{tpu_custom_call.1} parent=1 // pred_check_branch
      %12 = sbr.rel (0) target = $region5
    $region4: #{tpu_custom_call.1} parent=1 // pred_region
      %s14 = ssub.s32 128, 128
      %15 = vsyncadd [#allocation3], %s14
      %s16 = sshll.u32 [#allocation2], 4
      %s17 = int_to_ptr.vmem [resolvable:$true] %s16
      %22 = dma.hbm_to_vmem [thread:$0]  %s0, 128, %s17, [#allocation3], 64, 64, 4
    $region5: #{tpu_custom_call.1} parent=1 // pred_fallthru
      _
    // Predicated region
    $region6: #{tpu_custom_call.1} parent=1 // pred_check
      _
    $region7: #{tpu_custom_call.1} parent=1 // pred_check_branch
      %24 = sbr.rel (0) target = $region9
    $region8: #{tpu_custom_call.1} parent=1 // pred_region
      %s26 = ssub.s32 128, 128
      %27 = vsyncadd [#allocation6], %s26
      %s28 = sshll.u32 [#allocation5], 4
      %s29 = int_to_ptr.vmem [resolvable:$true] %s28
      %34 = dma.hbm_to_vmem [thread:$0]  %s1, 128, %s29, [#allocation6], 64, 64, 4
    $region9: #{tpu_custom_call.1} parent=1 // pred_fallthru
      _
    // Predicated region
    $region10: #{tpu_custom_call.1} parent=1 // pred_check
      _
    $region11: #{tpu_custom_call.1} parent=1 // pred_check_branch
      %36 = sbr.rel (0) target = $region13
    $region12: #{tpu_custom_call.1} parent=1 // pred_region
      %s38 = ssub.s32 768, 768
      %39 = vsyncadd [#allocation6], %s38
      %s40 = sshll.u32 [#allocation7], 4
      %s41 = int_to_ptr.vmem [resolvable:$true] %s40
      %46 = dma.hbm_to_vmem [thread:$0]  %s2, 768, %s41, [#allocation6], 128, 128, 8
    $region13: #{tpu_custom_call.1} parent=1 // pred_fallthru
      _
    // Predicated region
    $region14: #{tpu_custom_call.1} parent=1 // pred_check
      _
    $region15: #{tpu_custom_call.1} parent=1 // pred_check_branch
      %48 = sbr.rel (0) target = $region17
    $region16: #{tpu_custom_call.1} parent=1 // pred_region
      %49 = dma.done [#allocation3], 128
    $region17: #{tpu_custom_call.1} parent=1 // pred_fallthru
      _
    // Predicated region
    $region18: #{tpu_custom_call.1} parent=1 // pred_check
      _
    $region19: #{tpu_custom_call.1} parent=1 // pred_check_branch
      %51 = sbr.rel (0) target = $region21
    $region20: #{tpu_custom_call.1} parent=1 // pred_region
      %52 = dma.done [#allocation6], 128
    $region21: #{tpu_custom_call.1} parent=1 // pred_fallthru
      _
    // Predicated region
    $region22: #{tpu_custom_call.1} parent=1 // pred_check
      _
    $region23: #{tpu_custom_call.1} parent=1 // pred_check_branch
      %54 = sbr.rel (0) target = $region25
    $region24: #{tpu_custom_call.1} parent=1 // pred_region
      %55 = dma.done [#allocation6], 768
    $region25: #{tpu_custom_call.1} parent=1 // pred_fallthru
      _
    %v57 = vld [vmem:[#allocation2] sm:$0xf]
    %v58 = vld [vmem:[#allocation2 + $0x4] sm:$0xf]
    %v59 = vld [vmem:[#allocation5] sm:$0xf]
    %v60 = vld [vmem:[#allocation5 + $0x4] sm:$0xf]
    %v61 = vld [vmem:[#allocation7] sm:$0xff]
    %v62 = vld [vmem:[#allocation7 + $0x8] sm:$0xff]
    %v63 = vpack.c.bf16 %v62, %v61
    %v66 = vunpack.c.l.b16 %v59
    %v67 = vunpack.c.l.b16 %v60
    %v68 = vpack.c.b16 %v67, %v66
    %vm70 = vcmask 130048
    %v72 = vsel %vm70, %v63, 0
    %74 = vmatprep.subr.bf16.mxu0 0
    %75 = vmatpush1.bf16.msra.mxu0 %v68
    %76 = vmatprep.subr.bf16.mxu0 0
    %77 = vmatpush1.bf16.msra.mxu0 0
    %78 = vmatprep.subr.bf16.mxu0 0
    %79 = vmatpush1.bf16.msra.mxu0 0
    %80 = vmatprep.subr.bf16.mxu0 0
    %81 = vmatpush1.bf16.msra.mxu0 0
    %82 = vmatprep.subr.bf16.mxu0 0
    %83 = vmatpush1.bf16.msra.mxu0 0
    %84 = vmatprep.subr.bf16.mxu0 0
    %85 = vmatpush1.bf16.msra.mxu0 0
    %86 = vmatprep.subr.bf16.mxu0 0
    %87 = vmatpush1.bf16.msra.mxu0 0
    %88 = vmatprep.subr.bf16.mxu0 0
    %89 = vmatpush1.bf16.msra.mxu0 0
    %90 = vmatprep.subr.bf16.mxu0 0
    %91 = vmatpush1.bf16.msra.mxu0 0
    %92 = vmatprep.subr.bf16.mxu0 0
    %93 = vmatpush1.bf16.msra.mxu0 0
    %94 = vmatprep.subr.bf16.mxu0 0
    %95 = vmatpush1.bf16.msra.mxu0 0
    %96 = vmatprep.subr.bf16.mxu0 0
    %97 = vmatpush1.bf16.msra.mxu0 0
    %98 = vmatprep.subr.bf16.mxu0 0
    %99 = vmatpush1.bf16.msra.mxu0 0
    %100 = vmatprep.subr.bf16.mxu0 0
    %101 = vmatpush1.bf16.msra.mxu0 0
    %102 = vmatprep.subr.bf16.mxu0 0
    %103 = vmatpush1.bf16.msra.mxu0 0
    %104 = vmatprep.subr.bf16.mxu0 0
    %105 = vmatpush1.bf16.msra.mxu0 0
    %106 = vmatprep.mubr.bf16.mxu0 0
    %107 = vmatmul.mubr.bf16.gmra.mrb[0].mxu0 %v72
    %v108 = vpop.f32.mrb[0].mxu0
    %v109 = vadd.f32 0.0, %v108
    %v110 = vpop.f32.mrb[0].mxu0
    %v111 = vpop.f32.mrb[0].mxu0
    %v112 = vadd.f32 0.0, %v111
    %v113 = vpop.f32.mrb[0].mxu0
    %114 = vdwg.mxu0
    %v115 = vpack.c.bf16 %v112, %v109
    %v118 = vunpack.c.l.b16 %v57
    %v119 = vunpack.c.l.b16 %v58
    %v120 = vpack.c.b16 %v119, %v118
    %v122 = vsel %vm70, %v120, 0
    %124 = vmatprep.subr.bf16.mxu0 0
    %125 = vmatpush1.bf16.msra.mxu0 %v115
    %126 = vmatprep.subr.bf16.mxu0 0
    %127 = vmatpush1.bf16.msra.mxu0 0
    %128 = vmatprep.subr.bf16.mxu0 0
    %129 = vmatpush1.bf16.msra.mxu0 0
    %130 = vmatprep.subr.bf16.mxu0 0
    %131 = vmatpush1.bf16.msra.mxu0 0
    %132 = vmatprep.subr.bf16.mxu0 0
    %133 = vmatpush1.bf16.msra.mxu0 0
    %134 = vmatprep.subr.bf16.mxu0 0
    %135 = vmatpush1.bf16.msra.mxu0 0
    %136 = vmatprep.subr.bf16.mxu0 0
    %137 = vmatpush1.bf16.msra.mxu0 0
    %138 = vmatprep.subr.bf16.mxu0 0
    %139 = vmatpush1.bf16.msra.mxu0 0
    %140 = vmatprep.subr.bf16.mxu0 0
    %141 = vmatpush1.bf16.msra.mxu0 0
    %142 = vmatprep.subr.bf16.mxu0 0
    %143 = vmatpush1.bf16.msra.mxu0 0
    %144 = vmatprep.subr.bf16.mxu0 0
    %145 = vmatpush1.bf16.msra.mxu0 0
    %146 = vmatprep.subr.bf16.mxu0 0
    %147 = vmatpush1.bf16.msra.mxu0 0
    %148 = vmatprep.subr.bf16.mxu0 0
    %149 = vmatpush1.bf16.msra.mxu0 0
    %150 = vmatprep.subr.bf16.mxu0 0
    %151 = vmatpush1.bf16.msra.mxu0 0
    %152 = vmatprep.subr.bf16.mxu0 0
    %153 = vmatpush1.bf16.msra.mxu0 0
    %154 = vmatprep.subr.bf16.mxu0 0
    %155 = vmatpush1.bf16.msra.mxu0 0
    %156 = vmatprep.mubr.bf16.mxu0 0
    %157 = vmatmul.mubr.bf16.gmra.mrb[0].mxu0 %v122
    %v158 = vpop.f32.mrb[0].mxu0
    %v159 = vadd.f32 0.0, %v158
    %v160 = vpop.f32.mrb[0].mxu0
    %v161 = vpop.f32.mrb[0].mxu0
    %v162 = vadd.f32 0.0, %v161
    %v163 = vpop.f32.mrb[0].mxu0
    %164 = vdwg.mxu0
    %165 = vst [vmem:[#allocation8] sm:$0xff] %v159
    %166 = vst [vmem:[#allocation8 + $0x8] sm:$0xff] %v162
    %s167 = scalar_lea.vmem [#allocation7], 16
    %v168 = vld [vmem:[%s167] sm:$0xff]
    %v169 = vld [vmem:[%s167 + $0x8] sm:$0xff]
    %v170 = vpack.c.bf16 %v169, %v168
    %v172 = vsel %vm70, %v170, 0
    %174 = vmatprep.subr.bf16.mxu0 0
    %175 = vmatpush1.bf16.msra.mxu0 %v68
    %176 = vmatprep.subr.bf16.mxu0 0
    %177 = vmatpush1.bf16.msra.mxu0 0
    %178 = vmatprep.subr.bf16.mxu0 0
    %179 = vmatpush1.bf16.msra.mxu0 0
    %180 = vmatprep.subr.bf16.mxu0 0
    %181 = vmatpush1.bf16.msra.mxu0 0
    %182 = vmatprep.subr.bf16.mxu0 0
    %183 = vmatpush1.bf16.msra.mxu0 0
    %184 = vmatprep.subr.bf16.mxu0 0
    %185 = vmatpush1.bf16.msra.mxu0 0
    %186 = vmatprep.subr.bf16.mxu0 0
    %187 = vmatpush1.bf16.msra.mxu0 0
    %188 = vmatprep.subr.bf16.mxu0 0
    %189 = vmatpush1.bf16.msra.mxu0 0
    %190 = vmatprep.subr.bf16.mxu0 0
    %191 = vmatpush1.bf16.msra.mxu0 0
    %192 = vmatprep.subr.bf16.mxu0 0
    %193 = vmatpush1.bf16.msra.mxu0 0
    %194 = vmatprep.subr.bf16.mxu0 0
    %195 = vmatpush1.bf16.msra.mxu0 0
    %196 = vmatprep.subr.bf16.mxu0 0
    %197 = vmatpush1.bf16.msra.mxu0 0
    %198 = vmatprep.subr.bf16.mxu0 0
    %199 = vmatpush1.bf16.msra.mxu0 0
    %200 = vmatprep.subr.bf16.mxu0 0
    %201 = vmatpush1.bf16.msra.mxu0 0
    %202 = vmatprep.subr.bf16.mxu0 0
    %203 = vmatpush1.bf16.msra.mxu0 0
    %204 = vmatprep.subr.bf16.mxu0 0
    %205 = vmatpush1.bf16.msra.mxu0 0
    %206 = vmatprep.mubr.bf16.mxu0 0
    %207 = vmatmul.mubr.bf16.gmra.mrb[0].mxu0 %v172
    %v208 = vpop.f32.mrb[0].mxu0
    %v209 = vadd.f32 0.0, %v208
    %v210 = vpop.f32.mrb[0].mxu0
    %v211 = vpop.f32.mrb[0].mxu0
    %v212 = vadd.f32 0.0, %v211
    %v213 = vpop.f32.mrb[0].mxu0
    %214 = vdwg.mxu0
    %v215 = vpack.c.bf16 %v212, %v209
    %216 = vmatprep.subr.bf16.mxu0 0
    %217 = vmatpush1.bf16.msra.mxu0 %v215
    %218 = vmatprep.subr.bf16.mxu0 0
    %219 = vmatpush1.bf16.msra.mxu0 0
    %220 = vmatprep.subr.bf16.mxu0 0
    %221 = vmatpush1.bf16.msra.mxu0 0
    %222 = vmatprep.subr.bf16.mxu0 0
    %223 = vmatpush1.bf16.msra.mxu0 0
    %224 = vmatprep.subr.bf16.mxu0 0
    %225 = vmatpush1.bf16.msra.mxu0 0
    %226 = vmatprep.subr.bf16.mxu0 0
    %227 = vmatpush1.bf16.msra.mxu0 0
    %228 = vmatprep.subr.bf16.mxu0 0
    %229 = vmatpush1.bf16.msra.mxu0 0
    %230 = vmatprep.subr.bf16.mxu0 0
    %231 = vmatpush1.bf16.msra.mxu0 0
    %232 = vmatprep.subr.bf16.mxu0 0
    %233 = vmatpush1.bf16.msra.mxu0 0
    %234 = vmatprep.subr.bf16.mxu0 0
    %235 = vmatpush1.bf16.msra.mxu0 0
    %236 = vmatprep.subr.bf16.mxu0 0
    %237 = vmatpush1.bf16.msra.mxu0 0
    %238 = vmatprep.subr.bf16.mxu0 0
    %239 = vmatpush1.bf16.msra.mxu0 0
    %240 = vmatprep.subr.bf16.mxu0 0
    %241 = vmatpush1.bf16.msra.mxu0 0
    %242 = vmatprep.subr.bf16.mxu0 0
    %243 = vmatpush1.bf16.msra.mxu0 0
    %244 = vmatprep.subr.bf16.mxu0 0
    %245 = vmatpush1.bf16.msra.mxu0 0
    %246 = vmatprep.subr.bf16.mxu0 0
    %247 = vmatpush1.bf16.msra.mxu0 0
    %248 = vmatprep.mubr.bf16.mxu0 0
    %249 = vmatmul.mubr.bf16.gmra.mrb[0].mxu0 %v122
    %v250 = vpop.f32.mrb[0].mxu0
    %v251 = vadd.f32 0.0, %v250
    %v252 = vpop.f32.mrb[0].mxu0
    %v253 = vpop.f32.mrb[0].mxu0
    %v254 = vadd.f32 0.0, %v253
    %v255 = vpop.f32.mrb[0].mxu0
    %256 = vdwg.mxu0
    %s257 = scalar_lea.vmem [#allocation8], 16
    %258 = vst [vmem:[%s257] sm:$0xff] %v251
    %259 = vst [vmem:[%s257 + $0x8] sm:$0xff] %v254
    %s260 = scalar_lea.vmem [#allocation7], 32
    %v261 = vld [vmem:[%s260] sm:$0xff]
    %v262 = vld [vmem:[%s260 + $0x8] sm:$0xff]
    %v263 = vpack.c.bf16 %v262, %v261
    %v265 = vsel %vm70, %v263, 0
    %267 = vmatprep.subr.bf16.mxu0 0
    %268 = vmatpush1.bf16.msra.mxu0 %v68
    %269 = vmatprep.subr.bf16.mxu0 0
    %270 = vmatpush1.bf16.msra.mxu0 0
    %271 = vmatprep.subr.bf16.mxu0 0
    %272 = vmatpush1.bf16.msra.mxu0 0
    %273 = vmatprep.subr.bf16.mxu0 0
    %274 = vmatpush1.bf16.msra.mxu0 0
    %275 = vmatprep.subr.bf16.mxu0 0
    %276 = vmatpush1.bf16.msra.mxu0 0
    %277 = vmatprep.subr.bf16.mxu0 0
    %278 = vmatpush1.bf16.msra.mxu0 0
    %279 = vmatprep.subr.bf16.mxu0 0
    %280 = vmatpush1.bf16.msra.mxu0 0
    %281 = vmatprep.subr.bf16.mxu0 0
    %282 = vmatpush1.bf16.msra.mxu0 0
    %283 = vmatprep.subr.bf16.mxu0 0
    %284 = vmatpush1.bf16.msra.mxu0 0
    %285 = vmatprep.subr.bf16.mxu0 0
    %286 = vmatpush1.bf16.msra.mxu0 0
    %287 = vmatprep.subr.bf16.mxu0 0
    %288 = vmatpush1.bf16.msra.mxu0 0
    %289 = vmatprep.subr.bf16.mxu0 0
    %290 = vmatpush1.bf16.msra.mxu0 0
    %291 = vmatprep.subr.bf16.mxu0 0
    %292 = vmatpush1.bf16.msra.mxu0 0
    %293 = vmatprep.subr.bf16.mxu0 0
    %294 = vmatpush1.bf16.msra.mxu0 0
    %295 = vmatprep.subr.bf16.mxu0 0
    %296 = vmatpush1.bf16.msra.mxu0 0
    %297 = vmatprep.subr.bf16.mxu0 0
    %298 = vmatpush1.bf16.msra.mxu0 0
    %299 = vmatprep.mubr.bf16.mxu0 0
    %300 = vmatmul.mubr.bf16.gmra.mrb[0].mxu0 %v265
    %v301 = vpop.f32.mrb[0].mxu0
    %v302 = vadd.f32 0.0, %v301
    %v303 = vpop.f32.mrb[0].mxu0
    %v304 = vpop.f32.mrb[0].mxu0
    %v305 = vadd.f32 0.0, %v304
    %v306 = vpop.f32.mrb[0].mxu0
    %307 = vdwg.mxu0
    %v308 = vpack.c.bf16 %v305, %v302
    %309 = vmatprep.subr.bf16.mxu0 0
    %310 = vmatpush1.bf16.msra.mxu0 %v308
    %311 = vmatprep.subr.bf16.mxu0 0
    %312 = vmatpush1.bf16.msra.mxu0 0
    %313 = vmatprep.subr.bf16.mxu0 0
    %314 = vmatpush1.bf16.msra.mxu0 0
    %315 = vmatprep.subr.bf16.mxu0 0
    %316 = vmatpush1.bf16.msra.mxu0 0
    %317 = vmatprep.subr.bf16.mxu0 0
    %318 = vmatpush1.bf16.msra.mxu0 0
    %319 = vmatprep.subr.bf16.mxu0 0
    %320 = vmatpush1.bf16.msra.mxu0 0
    %321 = vmatprep.subr.bf16.mxu0 0
    %322 = vmatpush1.bf16.msra.mxu0 0
    %323 = vmatprep.subr.bf16.mxu0 0
    %324 = vmatpush1.bf16.msra.mxu0 0
    %325 = vmatprep.subr.bf16.mxu0 0
    %326 = vmatpush1.bf16.msra.mxu0 0
    %327 = vmatprep.subr.bf16.mxu0 0
    %328 = vmatpush1.bf16.msra.mxu0 0
    %329 = vmatprep.subr.bf16.mxu0 0
    %330 = vmatpush1.bf16.msra.mxu0 0
    %331 = vmatprep.subr.bf16.mxu0 0
    %332 = vmatpush1.bf16.msra.mxu0 0
    %333 = vmatprep.subr.bf16.mxu0 0
    %334 = vmatpush1.bf16.msra.mxu0 0
    %335 = vmatprep.subr.bf16.mxu0 0
    %336 = vmatpush1.bf16.msra.mxu0 0
    %337 = vmatprep.subr.bf16.mxu0 0
    %338 = vmatpush1.bf16.msra.mxu0 0
    %339 = vmatprep.subr.bf16.mxu0 0
    %340 = vmatpush1.bf16.msra.mxu0 0
    %341 = vmatprep.mubr.bf16.mxu0 0
    %342 = vmatmul.mubr.bf16.gmra.mrb[0].mxu0 %v122
    %v343 = vpop.f32.mrb[0].mxu0
    %v344 = vadd.f32 0.0, %v343
    %v345 = vpop.f32.mrb[0].mxu0
    %v346 = vpop.f32.mrb[0].mxu0
    %v347 = vadd.f32 0.0, %v346
    %v348 = vpop.f32.mrb[0].mxu0
    %349 = vdwg.mxu0
    %s350 = scalar_lea.vmem [#allocation8], 32
    %351 = vst [vmem:[%s350] sm:$0xff] %v344
    %352 = vst [vmem:[%s350 + $0x8] sm:$0xff] %v347
    // Predicated region
    $region26: #{tpu_custom_call.1} parent=1 // pred_check
      _
    $region27: #{tpu_custom_call.1} parent=1 // pred_check_branch
      %354 = sbr.rel (0) target = $region29
    $region28: #{tpu_custom_call.1} parent=1 // pred_region
      %s356 = ssub.s32 768, 768
      %357 = vsyncadd [#allocation4], %s356
      %s358 = sshll.u32 [#allocation8], 4
      %s359 = int_to_ptr.vmem [resolvable:$true] %s358
      %364 = dma.vmem_to_hbm [thread:$0]  %s359, 768, %s3, [#allocation4], 128, 128, 8
    $region29: #{tpu_custom_call.1} parent=1 // pred_fallthru
      _
    // Predicated region
    $region30: #{tpu_custom_call.1} parent=1 // pred_check
      _
    $region31: #{tpu_custom_call.1} parent=1 // pred_check_branch
      %366 = sbr.rel (0) target = $region33
    $region32: #{tpu_custom_call.1} parent=1 // pred_region
      %367 = dma.done [#allocation4], 768
    $region33: #{tpu_custom_call.1} parent=1 // pred_fallthru
      _
    %368 = vsyncpa [#allocation3], 1
    %369 = vsyncpa [#allocation6], 1
    %370 = vsyncpa [#allocation4], 1

</llo_original>
